<compile_context>
chip_gen: v5e
topology: v5e:2x2
jax: 0.10.0
libtpu: 0.0.40
codegen_flags: <defaults>
</compile_context>

<pallas_src>
import functools

import jax
import jax.numpy as jnp
from jax.experimental import pallas as pl
from jax.experimental.pallas import tpu as pltpu


def _iif_ce_kernel(pred_ref, iif_ref, label_ref, out_ref, acc_ref, *,
                   n_rows, ignore_index, loss_weight):
    step = pl.program_id(0)

    # Zero the running accumulator on the first grid step.
    @pl.when(step == 0)
    def _():
        acc_ref[...] = jnp.zeros_like(acc_ref)

    # Scale logits by per-class IIF weights; math in f32 regardless of the
    # HBM dtype of pred (bf16 upcast is a free VPU op).
    z = pred_ref[...].astype(jnp.float32) * iif_ref[...]      # (TM, C)

    # Numerically stable log-sum-exp.
    m = jnp.max(z, axis=-1, keepdims=True)                    # (TM, 1)
    e = jnp.exp(z - m)                                        # (TM, C)
    lse = m + jnp.log(jnp.sum(e, axis=-1, keepdims=True))     # (TM, 1)

    # Gather z[i, label[i]] with a lane-wise compare against iota.
    labels = label_ref[...]                                   # (TM, 1) int32
    col = jax.lax.broadcasted_iota(jnp.int32, z.shape, 1)     # (TM, C)
    tgt = jnp.sum(jnp.where(col == labels, z, 0.0),
                  axis=-1, keepdims=True)                     # (TM, 1)

    # Per-row NLL, zeroed where label == ignore_index (also zeroes any rows
    # that were padded in the wrapper, since they carry ignore_index labels).
    valid = (labels != ignore_index).astype(jnp.float32)      # (TM, 1)
    per_row = (lse - tgt) * valid                             # (TM, 1)

    # Accumulate this tile's partial sum.
    acc_ref[...] += jnp.sum(per_row, axis=0, keepdims=True)   # (1, 1)

    # Finalize: apply mean + loss_weight scaling exactly once.
    @pl.when(step == pl.num_programs(0) - 1)
    def _():
        out_ref[...] = (loss_weight / n_rows) * acc_ref[...]


def iif_loss(pred, labels, iif_weights, *,
             ignore_index=None, loss_weight=1.0, tile_rows=512):
    """pred: (N, C) f32/bf16, labels: (N,) int, iif_weights: (C,) -> scalar f32."""
    n, c = pred.shape
    ignore_index = -100 if ignore_index is None else int(ignore_index)

    # Row tile: multiple of 8 sublanes, capped at tile_rows (sized so that
    # 2 double-buffered (TM, C) f32 tiles plus elementwise temporaries stay
    # well under the 32 MiB scoped / 64 MiB physical VMEM budget on v7x).
    tm = min(int(tile_rows), max(8, n))
    tm = max(8, (tm // 8) * 8)
    n_pad = pl.cdiv(n, tm) * tm

    labels = labels.astype(jnp.int32)
    if n_pad != n:
        # Padded rows get ignore_index labels -> contribute 0 to the sum; the
        # mean still divides by the original N inside the kernel.
        pred = jnp.pad(pred, ((0, n_pad - n), (0, 0)))
        labels = jnp.pad(labels, (0, n_pad - n), constant_values=ignore_index)

    iif2d = iif_weights.reshape(1, c).astype(jnp.float32)
    labels2d = labels.reshape(n_pad, 1)

    kernel = functools.partial(
        _iif_ce_kernel,
        n_rows=float(n),
        ignore_index=ignore_index,
        loss_weight=float(loss_weight),
    )

    grid = (n_pad // tm,)
    out = pl.pallas_call(
        kernel,
        out_shape=jax.ShapeDtypeStruct((1, 1), jnp.float32),
        grid_spec=pltpu.PrefetchScalarGridSpec(
            num_scalar_prefetch=0,
            grid=grid,
            in_specs=[
                pl.BlockSpec((tm, c), lambda i: (i, 0)),   # pred tile
                pl.BlockSpec((1, c), lambda i: (0, 0)),    # iif weights (resident)
                pl.BlockSpec((tm, 1), lambda i: (i, 0)),   # labels tile
            ],
            out_specs=pl.BlockSpec((1, 1), lambda i: (0, 0)),
            scratch_shapes=[pltpu.VMEM((1, 1), jnp.float32)],
        ),
        compiler_params=pltpu.CompilerParams(
            dimension_semantics=("arbitrary",),   # accumulator across the row axis
            vmem_limit_bytes=32 * 1024 * 1024,
        ),
    )(pred, iif2d, labels2d)
    return out[0, 0]


def iif_loss_ref(pred, labels, iif_weights, *,
                 ignore_index=None, loss_weight=1.0):
    """Pure-JAX reference mirroring the PyTorch module's forward path."""
    ignore_index = -100 if ignore_index is None else ignore_index
    z = pred.astype(jnp.float32) * iif_weights.reshape(1, -1).astype(jnp.float32)
    logp = jax.nn.log_softmax(z, axis=-1)
    safe_labels = jnp.where(labels == ignore_index, 0, labels)
    nll = -jnp.take_along_axis(logp, safe_labels[:, None], axis=-1)[:, 0]
    nll = jnp.where(labels == ignore_index, 0.0, nll)
    return loss_weight * jnp.mean(nll)


if __name__ == "__main__":
    # Small synthetic config: num_classes = 127 -> C = num_classes + 1 = 128.
    num_classes = 127
    C = num_classes + 1
    N = 40            # small, but enough rows to exercise a multi-step grid
    TILE_ROWS = 16    # 40 rows -> padded to 48 -> 3 grid steps (tests padding)

    key = jax.random.PRNGKey(0)
    k_pred, k_lab = jax.random.split(key)

    pred = jax.random.normal(k_pred, (N, C), dtype=jnp.float32)
    labels = jax.random.randint(k_lab, (N,), 0, C, dtype=jnp.int32)
    # Mark a couple of rows as ignored to exercise the ignore_index path.
    labels = labels.at[3].set(-100).at[17].set(-100)

    # Deterministic synthetic IIF weights (stand-in for the CSV column):
    # values in [0.5, 2.0], last entry forced to 1.0 (background class),
    # mirroring `iif_weights[1:] + [1.0]` in the module.
    iif_weights = jnp.linspace(0.5, 2.0, C, dtype=jnp.float32)
    iif_weights = iif_weights.at[-1].set(1.0)
    # TODO(synk): real module loads per-class IDF values from a CSV file.

    loss = iif_loss(pred, labels, iif_weights,
                    loss_weight=1.0, tile_rows=TILE_ROWS)
    loss = jax.block_until_ready(loss)

    ref = iif_loss_ref(pred, labels, iif_weights, loss_weight=1.0)
    assert jnp.allclose(loss, ref, rtol=1e-5, atol=1e-5), (loss, ref)

    print("KERNEL_OK")
</pallas_src>

<mosaic_0001>
module attributes {stable_mosaic.version = 11 : i64} {
  func.func @_iif_ce_kernel(%arg0: i32, %arg1: memref<16x128xf32, #tpu.memory_space<vmem>>, %arg2: memref<1x128xf32, #tpu.memory_space<vmem>>, %arg3: memref<16x1xi32, #tpu.memory_space<vmem>>, %arg4: memref<1x1xf32, #tpu.memory_space<vmem>>, %arg5: memref<1x1xf32, #tpu.memory_space<vmem>>) attributes {dimension_semantics = [#tpu.dimension_semantics<arbitrary>], iteration_bounds = array<i64: 3>, scalar_prefetch = 0 : i64, scratch_operands = 1 : i64, tpu.core_type = #tpu.core_type<tc>, window_params = [{transform_indices = @transform_0, window_bounds = array<i64: 16, 128>}, {pipeline_mode = #tpu.pipeline_mode<synchronous>, transform_indices = @transform_1, window_bounds = array<i64: 1, 128>}, {transform_indices = @transform_2, window_bounds = array<i64: 16, 1>}, {pipeline_mode = #tpu.pipeline_mode<synchronous>, transform_indices = @transform_3, window_bounds = array<i64: 1, 1>}]} {
    %c0_i32 = arith.constant 0 : i32
    %0 = arith.cmpi eq, %arg0, %c0_i32 : i32
    %1 = arith.extui %0 : i1 to i32
    %c0_i32_0 = arith.constant 0 : i32
    %2 = arith.cmpi ne, %1, %c0_i32_0 : i32
    scf.if %2 {
      %cst_15 = arith.constant 0.000000e+00 : f32
      %38 = vector.broadcast %cst_15 : f32 to vector<1x1xf32>
      %c0_16 = arith.constant 0 : index
      %c0_17 = arith.constant 0 : index
      %39 = vector.load %arg5[%c0_16, %c0_17] : memref<1x1xf32, #tpu.memory_space<vmem>>, vector<1x1xf32>
      tpu.vector_store %arg5[%c0_16, %c0_17], %38 {strides = array<i32>} : memref<1x1xf32, #tpu.memory_space<vmem>>, vector<1x1xf32>,
    } else {
    }
    %c0 = arith.constant 0 : index
    %c0_1 = arith.constant 0 : index
    %3 = vector.load %arg1[%c0, %c0_1] : memref<16x128xf32, #tpu.memory_space<vmem>>, vector<16x128xf32>
    %c0_2 = arith.constant 0 : index
    %c0_3 = arith.constant 0 : index
    %4 = vector.load %arg2[%c0_2, %c0_3] : memref<1x128xf32, #tpu.memory_space<vmem>>, vector<1x128xf32>
    %5 = vector.broadcast %4 : vector<1x128xf32> to vector<16x128xf32>
    %6 = arith.mulf %3, %5 : vector<16x128xf32>
    %cst = arith.constant dense<0xFF800000> : vector<16xf32>
    %7 = vector.multi_reduction <maximumf>, %6, %cst [1] : vector<16x128xf32> to vector<16xf32>
    %8 = vector.shape_cast %7 : vector<16xf32> to vector<16x1xf32>
    %9 = vector.broadcast %8 : vector<16x1xf32> to vector<16x128xf32>
    %10 = arith.subf %6, %9 : vector<16x128xf32>
    %11 = math.exp %10 : vector<16x128xf32>
    %cst_4 = arith.constant dense<0.000000e+00> : vector<16xf32>
    %12 = vector.multi_reduction <add>, %11, %cst_4 [1] : vector<16x128xf32> to vector<16xf32>
    %13 = vector.shape_cast %12 : vector<16xf32> to vector<16x1xf32>
    %14 = math.log %13 : vector<16x1xf32>
    %15 = arith.addf %8, %14 : vector<16x1xf32>
    %c0_5 = arith.constant 0 : index
    %c0_6 = arith.constant 0 : index
    %16 = vector.load %arg3[%c0_5, %c0_6] : memref<16x1xi32, #tpu.memory_space<vmem>>, vector<16x1xi32>
    %17 = tpu.iota {dimensions = array<i32: 1>} : vector<16x128xi32>
    %18 = vector.broadcast %16 : vector<16x1xi32> to vector<16x128xi32>
    %19 = arith.cmpi eq, %17, %18 : vector<16x128xi32>
    %cst_7 = arith.constant 0.000000e+00 : f32
    %20 = vector.broadcast %cst_7 : f32 to vector<16x128xf32>
    %21 = arith.select %19, %6, %20 : vector<16x128xi1>, vector<16x128xf32>
    %cst_8 = arith.constant dense<0.000000e+00> : vector<16xf32>
    %22 = vector.multi_reduction <add>, %21, %cst_8 [1] : vector<16x128xf32> to vector<16xf32>
    %23 = vector.shape_cast %22 : vector<16xf32> to vector<16x1xf32>
    %c-100_i32 = arith.constant -100 : i32
    %24 = vector.broadcast %c-100_i32 : i32 to vector<16x1xi32>
    %25 = arith.cmpi ne, %16, %24 : vector<16x1xi32>
    %26 = arith.extui %25 : vector<16x1xi1> to vector<16x1xi32>
    %27 = arith.sitofp %26 : vector<16x1xi32> to vector<16x1xf32>
    %28 = arith.subf %15, %23 : vector<16x1xf32>
    %29 = arith.mulf %28, %27 : vector<16x1xf32>
    %c0_9 = arith.constant 0 : index
    %c0_10 = arith.constant 0 : index
    %30 = vector.load %arg5[%c0_9, %c0_10] : memref<1x1xf32, #tpu.memory_space<vmem>>, vector<1x1xf32>
    %cst_11 = arith.constant dense<0.000000e+00> : vector<1xf32>
    %31 = vector.multi_reduction <add>, %29, %cst_11 [0] : vector<16x1xf32> to vector<1xf32>
    %32 = vector.shape_cast %31 : vector<1xf32> to vector<1x1xf32>
    %33 = arith.addf %30, %32 : vector<1x1xf32>
    %c0_12 = arith.constant 0 : index
    %c0_13 = arith.constant 0 : index
    %34 = vector.load %arg5[%c0_12, %c0_13] : memref<1x1xf32, #tpu.memory_space<vmem>>, vector<1x1xf32>
    tpu.vector_store %arg5[%c0_12, %c0_13], %33 {strides = array<i32>} : memref<1x1xf32, #tpu.memory_space<vmem>>, vector<1x1xf32>,
    %c2_i32 = arith.constant 2 : i32
    %35 = arith.cmpi eq, %arg0, %c2_i32 : i32
    %36 = arith.extui %35 : i1 to i32
    %c0_i32_14 = arith.constant 0 : i32
    %37 = arith.cmpi ne, %36, %c0_i32_14 : i32
    scf.if %37 {
      %c0_15 = arith.constant 0 : index
      %c0_16 = arith.constant 0 : index
      %38 = vector.load %arg5[%c0_15, %c0_16] : memref<1x1xf32, #tpu.memory_space<vmem>>, vector<1x1xf32>
      %cst_17 = arith.constant 2.500000e-02 : f32
      %39 = vector.broadcast %cst_17 : f32 to vector<1x1xf32>
      %40 = arith.mulf %39, %38 : vector<1x1xf32>
      %c0_18 = arith.constant 0 : index
      %c0_19 = arith.constant 0 : index
      %41 = vector.load %arg4[%c0_18, %c0_19] : memref<1x1xf32, #tpu.memory_space<vmem>>, vector<1x1xf32>
      tpu.vector_store %arg4[%c0_18, %c0_19], %40 {strides = array<i32>} : memref<1x1xf32, #tpu.memory_space<vmem>>, vector<1x1xf32>,
    } else {
    }
    return
  }
  func.func @transform_0(%arg0: i32) -> (i32, i32) {
    %c0_i32 = arith.constant 0 : i32
    %c0_i32_0 = arith.constant 0 : i32
    return %arg0, %c0_i32 : i32, i32
  }
  func.func @transform_1(%arg0: i32) -> (i32, i32) {
    %c0_i32 = arith.constant 0 : i32
    %c0_i32_0 = arith.constant 0 : i32
    %c0_i32_1 = arith.constant 0 : i32
    return %c0_i32, %c0_i32_0 : i32, i32
  }
  func.func @transform_2(%arg0: i32) -> (i32, i32) {
    %c0_i32 = arith.constant 0 : i32
    %c0_i32_0 = arith.constant 0 : i32
    return %arg0, %c0_i32 : i32, i32
  }
  func.func @transform_3(%arg0: i32) -> (i32, i32) {
    %c0_i32 = arith.constant 0 : i32
    %c0_i32_0 = arith.constant 0 : i32
    %c0_i32_1 = arith.constant 0 : i32
    return %c0_i32, %c0_i32_0 : i32, i32
  }
}

</mosaic_0001>

<llo_original>
// kernel: tpu_custom_call.1
$region0: #{tpu_custom_call.1}
  #allocation0 [shape = 'u32[]', space=smem, size = 0x4, offset = 0x4, fixed_abs, tag = 'smem constant byte address 0x4 - core index']
  #allocation1 [shape = 'u32[72,128]{1,0:T(1,128)}', space=vmem, size = 0x9000, scoped, tag = 'internal scratch']
  #allocation2 [shape = 'f32[1,1]{1,0:T(1,128)}', space=vmem, size = 0x200, scoped, tag = 'scratch operand']
  %s0 = inlined_call_operand.vmem [shape: f32[48,128], index: 0, kind: input, shape index: {}]
  %s1 = inlined_call_operand.vmem [shape: f32[1,128], index: 1, kind: input, shape index: {}]
  %s2 = inlined_call_operand.vmem [shape: s32[48,1], index: 2, kind: input, shape index: {}]
  %s3 = inlined_call_operand.hbm [shape: f32[1,1], index: 3, kind: output, shape index: {}]
  %s4 = sld [smem:[#allocation0]]
  $region53: #{tpu_custom_call.1} parent=0
    _
  %s6 = ssub.s32 1, %s4
  %s7 = scalar_select 0, %s6, %s4
  $region1: #{tpu_custom_call.1} parent=0
    #allocation3 [shape = 'u8[512]{0}', space=vmem, size = 0x400, scoped, tag = 'output window, operand 0, single buffered']
    #allocation4 [shape = 's32[2]{0}', space=sflag, size = 0x8, scoped, tag = 'scoped memory for tpu_custom_call.1']
    %8 = vsyncpa [#allocation4], 0
    loop: start=0, step=1, limit=5
    $region2: #{tpu_custom_call.1} parent=1 // loop_pre_header
      _
    $region3: #{tpu_custom_call.1} parent=1 // loop_header
      %s10 = sphi 0, %s14
      %p11 = scmp.ge.s32.totalorder %s10, 5
      %s20 = sphi 0, %s22
      %s23 = sphi 0, %s20
      %s24 = sphi 0, %s23
      %s40 = sphi 0, %s24
      %s44 = sphi 0, %s44
      %s46 = sphi 0, %s44
      %s47 = sphi 0, %s46
      %s61 = sphi 0, %s47
      %s67 = sphi 0, %s69
      %s70 = sphi 0, %s67
      %s71 = sphi 0, %s70
      %s87 = sphi 0, %s71
      %s91 = sphi 0, %s91
      %s93 = sphi 0, %s91
      %s94 = sphi 0, %s93
      %s108 = sphi 0, %s94
    $region4: #{tpu_custom_call.1} parent=1 // loop_header_branch
      %13 = sbr.rel (%p11) target = $region8
    $region5: #{tpu_custom_call.1} parent=1 // loop_body
      %s15 = ssub.s32 %s10, 1
      %s16 = ssub.s32 %s10, 2
      %s17 = sadd.s32 %s10, 1
      %s18 = ssub.s32 %s10, %s17
      %p19 = scmp.eq.s32.totalorder %s18, 0
      %s21 = sadd.s32 %s20, 1
      %s22 = scalar_select %p19, %s20, %s21
      %p25 = pneg %p19
      %p26 = scmp.eq.s32.totalorder %s10, 2
      %p27 = por %p25, %p26
      %p28 = scmp.ne.s32.totalorder %s20, %s23
      %p29 = scmp.eq.s32.totalorder %s10, 0
      %p30 = por %p28, %p29
      %p31 = scmp.ne.s32.totalorder %s20, %s23
      %p32 = scmp.eq.s32.totalorder %s15, 2
      %p33 = por %p31, %p32
      %p34 = scmp.ne.s32.totalorder %s23, %s24
      %p35 = scmp.eq.s32.totalorder %s15, 0
      %p36 = por %p34, %p35
      %p37 = scmp.ne.s32.totalorder %s23, %s24
      %p38 = scmp.eq.s32.totalorder %s16, 2
      %p39 = por %p37, %p38
      %p41 = scmp.ne.s32.totalorder %s24, %s40
      %p42 = scmp.eq.s32.totalorder %s16, 0
      %p43 = por %p41, %p42
      %s45 = sadd.s32 %s44, 1
      %p48 = scmp.eq.s32.totalorder %s10, 2
      %p49 = scmp.ne.s32.totalorder %s44, %s46
      %p50 = scmp.eq.s32.totalorder %s10, 0
      %p51 = por %p49, %p50
      %p52 = scmp.ne.s32.totalorder %s44, %s46
      %p53 = scmp.eq.s32.totalorder %s15, 2
      %p54 = por %p52, %p53
      %p55 = scmp.ne.s32.totalorder %s46, %s47
      %p56 = scmp.eq.s32.totalorder %s15, 0
      %p57 = por %p55, %p56
      %p58 = scmp.ne.s32.totalorder %s46, %s47
      %p59 = scmp.eq.s32.totalorder %s16, 2
      %p60 = por %p58, %p59
      %p62 = scmp.ne.s32.totalorder %s47, %s61
      %p63 = scmp.eq.s32.totalorder %s16, 0
      %p64 = por %p62, %p63
      %s65 = ssub.s32 %s10, %s17
      %p66 = scmp.eq.s32.totalorder %s65, 0
      %s68 = sadd.s32 %s67, 1
      %s69 = scalar_select %p66, %s67, %s68
      %p72 = pneg %p66
      %p73 = scmp.eq.s32.totalorder %s10, 2
      %p74 = por %p72, %p73
      %p75 = scmp.ne.s32.totalorder %s67, %s70
      %p76 = scmp.eq.s32.totalorder %s10, 0
      %p77 = por %p75, %p76
      %p78 = scmp.ne.s32.totalorder %s67, %s70
      %p79 = scmp.eq.s32.totalorder %s15, 2
      %p80 = por %p78, %p79
      %p81 = scmp.ne.s32.totalorder %s70, %s71
      %p82 = scmp.eq.s32.totalorder %s15, 0
      %p83 = por %p81, %p82
      %p84 = scmp.ne.s32.totalorder %s70, %s71
      %p85 = scmp.eq.s32.totalorder %s16, 2
      %p86 = por %p84, %p85
      %p88 = scmp.ne.s32.totalorder %s71, %s87
      %p89 = scmp.eq.s32.totalorder %s16, 0
      %p90 = por %p88, %p89
      %s92 = sadd.s32 %s91, 1
      %p95 = scmp.eq.s32.totalorder %s10, 2
      %p96 = scmp.ne.s32.totalorder %s91, %s93
      %p97 = scmp.eq.s32.totalorder %s10, 0
      %p98 = por %p96, %p97
      %p99 = scmp.ne.s32.totalorder %s91, %s93
      %p100 = scmp.eq.s32.totalorder %s15, 2
      %p101 = por %p99, %p100
      %p102 = scmp.ne.s32.totalorder %s93, %s94
      %p103 = scmp.eq.s32.totalorder %s15, 0
      %p104 = por %p102, %p103
      %p105 = scmp.ne.s32.totalorder %s93, %s94
      %p106 = scmp.eq.s32.totalorder %s16, 2
      %p107 = por %p105, %p106
      %p109 = scmp.ne.s32.totalorder %s94, %s108
      %p110 = scmp.eq.s32.totalorder %s16, 0
      %p111 = por %p109, %p110
      %p112 = scmp.le.s32.totalorder 1, %s10
      %p113 = scmp.lt.s32.totalorder %s10, 4
      %p114 = pnand %p112, %p113
      %p115 = pneg %p114
      // Predicated region
      $region9: #{tpu_custom_call.1} parent=5 // pred_check
        _
      $region10: #{tpu_custom_call.1} parent=5 // pred_check_branch
        %117 = sbr.rel (%p114) target = $region12
      $region11: #{tpu_custom_call.1} parent=5 // pred_region
        %s118 = ssub.s32 %s10, 1
        // Predicated region
        $region13: #{tpu_custom_call.1} parent=11 // pred_check
          %p119 = pneg %p57
        $region14: #{tpu_custom_call.1} parent=11 // pred_check_branch
          %121 = sbr.rel (%p119) target = $region16
        $region15: #{tpu_custom_call.1} parent=11 // pred_region
          _
        $region16: #{tpu_custom_call.1} parent=11 // pred_fallthru
          _
      $region12: #{tpu_custom_call.1} parent=5 // pred_fallthru
        _
      %p122 = scmp.lt.s32.totalorder %s10, 3
      // Predicated region
      $region17: #{tpu_custom_call.1} parent=5 // pred_check
        %p123 = pneg %p122
      $region18: #{tpu_custom_call.1} parent=5 // pred_check_branch
        %125 = sbr.rel (%p123) target = $region20
      $region19: #{tpu_custom_call.1} parent=5 // pred_region
        // Predicated region
        $region21: #{tpu_custom_call.1} parent=19 // pred_check
          %p126 = pneg %p30
        $region22: #{tpu_custom_call.1} parent=19 // pred_check_branch
          %128 = sbr.rel (%p126) target = $region24
        $region23: #{tpu_custom_call.1} parent=19 // pred_region
          %s129 = smul.u32 2, %s10
          %p130 = scmp.lt.s32.totalorder %s129, 5
          %s131 = scalar_select %p130, %s129, 5
          %s132 = smul.addr %s131, 8
          %s133 = scalar_lea.vmem %s0, %s132
          %s134 = smul.u32 2, %s10
        $region24: #{tpu_custom_call.1} parent=19 // pred_fallthru
          _
        // Predicated region
        $region25: #{tpu_custom_call.1} parent=19 // pred_check
          %p135 = pneg %p77
        $region26: #{tpu_custom_call.1} parent=19 // pred_check_branch
          %137 = sbr.rel (%p135) target = $region28
        $region27: #{tpu_custom_call.1} parent=19 // pred_region
          %s138 = smul.u32 2, %s10
          %p139 = scmp.lt.s32.totalorder %s138, 5
          %s140 = scalar_select %p139, %s138, 5
          %s141 = smul.addr %s140, 8
          %s142 = scalar_lea.vmem %s2, %s141
          %s143 = smul.u32 2, %s10
        $region28: #{tpu_custom_call.1} parent=19 // pred_fallthru
          _
      $region20: #{tpu_custom_call.1} parent=5 // pred_fallthru
        _
      %p144 = scmp.le.s32.totalorder 1, %s10
      %p145 = scmp.lt.s32.totalorder %s10, 4
      %p146 = pnand %p144, %p145
      %p147 = pneg %p146
      // Predicated region
      $region29: #{tpu_custom_call.1} parent=5 // pred_check
        _
      $region30: #{tpu_custom_call.1} parent=5 // pred_check_branch
        %149 = sbr.rel (%p146) target = $region32
      $region31: #{tpu_custom_call.1} parent=5 // pred_region
        %s150 = ssub.s32 %s10, 1
        %s151 = smul.u32 2, %s15
        %p152 = scmp.lt.s32.totalorder %s151, 5
        %s153 = scalar_select %p152, %s151, 5
        %s154 = smul.addr %s153, 8
        %s155 = scalar_lea.vmem %s0, %s154
        %p156 = pneg %p36
        %p157 = pneg %p33
        %p158 = pneg %p57
        %p159 = pneg %p54
        %s160 = smul.u32 2, %s15
        %p161 = scmp.lt.s32.totalorder %s160, 5
        %s162 = scalar_select %p161, %s160, 5
        %s163 = smul.addr %s162, 8
        %s164 = scalar_lea.vmem %s2, %s163
        %p165 = pneg %p83
        %p166 = pneg %p80
        %p167 = pneg %p104
        %p168 = pneg %p101
        %s169 = smul.u32 2, %s15
        %p170 = scmp.lt.s32.totalorder %s169, 5
        %s171 = scalar_select %p170, %s169, 5
        %s172 = smul.addr %s171, 8
        %s173 = scalar_lea.vmem %s0, %s172
        %s174 = smul.u32 2, %s15
        %s175 = smul.u32 2, %s15
        %p176 = scmp.lt.s32.totalorder %s175, 5
        %s177 = scalar_select %p176, %s175, 5
        %s178 = smul.addr %s177, 8
        %s179 = scalar_lea.vmem %s2, %s178
        %s180 = smul.u32 2, %s15
        %p181 = scmp.eq.s32.totalorder %s15, 0
        // Predicated region
        $region33: #{tpu_custom_call.1} parent=31 // pred_check
          %p182 = pneg %p181
        $region34: #{tpu_custom_call.1} parent=31 // pred_check_branch
          %184 = sbr.rel (%p182) target = $region36
        $region35: #{tpu_custom_call.1} parent=31 // pred_region
          %vm185 = vcmask 0
          %186 = vst.msk [vmem:[#allocation2] sm:$0x1] %vm185, 0.0
        $region36: #{tpu_custom_call.1} parent=31 // pred_fallthru
          _
        %v187 = vld [vmem:[%s173] sm:$0xff]
        %v188 = vld [vmem:[%s173 + $0x8] sm:$0xff]
        %v189 = vld [vmem:[%s1] sm:$0x1]
        %v191 = vperm.slane %v189, 0
        %v193 = vmul.f32 %v187, %v191
        %v194 = vmul.f32 %v188, %v191
        %195 = vmax.xlane.f32.xlu0 %v193
        %v196 = vpop.xlane.xlu0 %195
        %197 = vmax.xlane.f32.xlu0 %v194
        %v198 = vpop.xlane.xlu0 %197
        %v199 = vsub.f32 %v193, %v196
        %v200 = vsub.f32 %v194, %v198
        %v201 = vmul.f32 %v199, 1.442695
        %v202 = vpow.pop %v201
        %v203 = vmul.f32 %v200, 1.442695
        %v204 = vpow.pop %v203
        %205 = vadd.xlane.f32.xlu0 %v202
        %v206 = vpop.xlane.xlu0 %205
        %207 = vadd.xlane.f32.xlu0 %v204
        %v208 = vpop.xlane.xlu0 %207
        %v209 = vlog2.pop %v206
        %v210 = vmul.f32 %v209, 0.6931472
        %v211 = vlog2.pop %v208
        %v212 = vmul.f32 %v211, 0.6931472
        %v213 = vadd.f32 %v196, %v210
        %v214 = vadd.f32 %v198, %v212
        %v215 = vld [vmem:[%s179] sm:$0xff]
        %v216 = vld [vmem:[%s179 + $0x8] sm:$0xff]
        %v217 = vlaneseq
        %v218 = vand.u32 %v217, 127
        %219 = vset.pattern.permute.xlu0 0
        %220 = vperm.xlu0 %219, %v215
        %v221 = vpop.permute.xlu0 %220
        %222 = vset.pattern.permute.xlu0 0
        %223 = vperm.xlu0 %222, %v216
        %v224 = vpop.permute.xlu0 %223
        %vm225 = vcmp.eq.s32.totalorder %v218, %v221
        %vm226 = vcmp.eq.s32.totalorder %v218, %v224
        %v227 = vsel %vm225, %v193, 0.0
        %v228 = vsel %vm226, %v194, 0.0
        %229 = vadd.xlane.f32.xlu0 %v227
        %v230 = vpop.xlane.xlu0 %229
        %231 = vadd.xlane.f32.xlu0 %v228
        %v232 = vpop.xlane.xlu0 %231
        %vm233 = vcmp.ne.s32.totalorder %v215, 4294967196
        %vm234 = vcmp.ne.s32.totalorder %v216, 4294967196
        %v235 = vsel %vm233, 1, 0
        %v236 = vsel %vm234, 1, 0
        %v237 = vcvt.s32.f32 %v235
        %v238 = vcvt.s32.f32 %v236
        %v239 = vsub.f32 %v213, %v230
        %v240 = vsub.f32 %v214, %v232
        %v241 = vmul.f32 %v239, %v237
        %v242 = vmul.f32 %v240, %v238
        %v243 = vld [vmem:[#allocation2] sm:$0x1]
        %vm244 = vcmask 7168
        %v245 = vsel %vm244, %v241, 0.0
        %v246 = vsel %vm244, %v242, 0.0
        %v247 = vadd.f32 %v245, %v246
        %v248 = vrot.slane %v247, 4
        %v249 = vadd.f32 %v247, %v248
        %v250 = vrot.slane %v249, 2
        %v251 = vadd.f32 %v249, %v250
        %v252 = vrot.slane %v251, 1
        %v253 = vadd.f32 %v251, %v252
        %v254 = vadd.f32 %v243, %v253
        %vm255 = vcmask 0
        %256 = vst.msk [vmem:[#allocation2] sm:$0x1] %vm255, %v254
        %p257 = scmp.eq.s32.totalorder %s15, 2
        // Predicated region
        $region37: #{tpu_custom_call.1} parent=31 // pred_check
          %p258 = pneg %p257
        $region38: #{tpu_custom_call.1} parent=31 // pred_check_branch
          %260 = sbr.rel (%p258) target = $region40
        $region39: #{tpu_custom_call.1} parent=31 // pred_region
          %v261 = vld [vmem:[#allocation2] sm:$0x1]
          %v262 = vmul.f32 %v261, 0.025
          %263 = vst.msk [vmem:[#allocation3] sm:$0x1] %vm255, %v262
        $region40: #{tpu_custom_call.1} parent=31 // pred_fallthru
          _
        // Predicated region
        $region41: #{tpu_custom_call.1} parent=31 // pred_check
          %p264 = pneg %p101
        $region42: #{tpu_custom_call.1} parent=31 // pred_check_branch
          %266 = sbr.rel (%p264) target = $region44
        $region43: #{tpu_custom_call.1} parent=31 // pred_region
          %268 = vsyncadd [#allocation4], 0
          %s270 = sshll.u32 [#allocation3], 4
          %s271 = int_to_ptr.vmem [resolvable:$true] %s270
          %s272 = sshll.u32 %s3, 4
          %s273 = int_to_ptr.hbm [resolvable:$true] %s272
          %275 = dma.vmem_to_hbm [thread:$0]  %s271, 16, %s273, [#allocation4]
        $region44: #{tpu_custom_call.1} parent=31 // pred_fallthru
          _
        // Predicated region
        $region45: #{tpu_custom_call.1} parent=31 // pred_check
          %p276 = pneg %p101
        $region46: #{tpu_custom_call.1} parent=31 // pred_check_branch
          %278 = sbr.rel (%p276) target = $region48
        $region47: #{tpu_custom_call.1} parent=31 // pred_region
          %280 = dma.done [#allocation4], 16
        $region48: #{tpu_custom_call.1} parent=31 // pred_fallthru
          _
      $region32: #{tpu_custom_call.1} parent=5 // pred_fallthru
        _
      %p281 = scmp.le.s32.totalorder 2, %s10
      // Predicated region
      $region49: #{tpu_custom_call.1} parent=5 // pred_check
        %p282 = pneg %p281
      $region50: #{tpu_custom_call.1} parent=5 // pred_check_branch
        %284 = sbr.rel (%p282) target = $region52
      $region51: #{tpu_custom_call.1} parent=5 // pred_region
        %s285 = ssub.s32 %s10, 2
      $region52: #{tpu_custom_call.1} parent=5 // pred_fallthru
        _
    $region6: #{tpu_custom_call.1} parent=1 // loop_footer
      %s14 = sadd.s32 1, %s10
    $region7: #{tpu_custom_call.1} parent=1 // loop_footer_branch
      %9 = sbr.rel target = $region3
    $region8: #{tpu_custom_call.1} parent=1 // loop_exit
      _
    %286 = vsyncpa [#allocation4], 1
    %s287 = scalar_lea.sflag [#allocation4], 1
    %288 = vsyncpa %s287, 1

</llo_original>
